<compile_context>
chip_gen: v5e
topology: v5e:2x2
jax: 0.10.0
libtpu: 0.0.40
codegen_flags: <defaults>
</compile_context>

<pallas_src>
import functools

import numpy as np
import jax
import jax.numpy as jnp
from jax.experimental import pallas as pl
from jax.experimental.pallas import tpu as pltpu

_EPS = 1e-6   # matches nn.BatchNorm3d(eps=1e-06) in the module spec


# ----------------------------------------------------------------------------
# VMEM budget / tiling helpers
# ----------------------------------------------------------------------------
def _vmem_limit_bytes():
    """Scoped-VMEM budget per generation: ~48 MiB on v7x, ~96 MiB on v5e/v6e."""
    cap = 64 << 20                        # conservative default (v7x per-core VMEM)
    try:
        info = pltpu.get_tpu_info()
        cap = int(getattr(info, "vmem_capacity_bytes", cap) or cap)
    except Exception:
        pass
    return int(min(cap * 3 // 4, 96 << 20))


def _pick_batch_tile(b, f, h, w, c, act_budget_bytes):
    """Largest divisor of b whose conv-pass footprint fits the activation budget.

    Prefers keeping >= 2 grid steps on the parallel axis so v7x megacore can
    split the work across both TensorCores.
    """
    wc = w * c
    # Per-row bytes: double-buffered in/out channel-plane blocks + xpack + acc
    # f32 scratches + bf16 K-stacked patch scratch + f32 intermediate headroom.
    bytes_per_row = 16 * w + 4 * wc + 4 * wc + 2 * 9 * wc + 4 * 3 * wc
    max_rows = max(act_budget_bytes // bytes_per_row, f * h)
    cands = [bt for bt in range(1, b + 1) if b % bt == 0 and bt * f * h <= max_rows]
    if not cands:
        return 1
    multi = [bt for bt in cands if b // bt >= 2]
    return max(multi) if multi else max(cands)


# ----------------------------------------------------------------------------
# Pass 1: BatchNorm3d batch statistics (parallel per-tile per-channel partials)
# ----------------------------------------------------------------------------
def _stats_kernel(x_ref, sum_ref, sq_ref):
    xs = x_ref[...]                                     # (bt, f, c, h*w) f32
    c = xs.shape[2]
    t = jnp.sum(jnp.sum(xs, axis=0), axis=0)            # (c, h*w)
    t2 = jnp.sum(jnp.sum(xs * xs, axis=0), axis=0)      # (c, h*w)
    sum_ref[...] = jnp.sum(t, axis=1, keepdims=True).reshape(1, c, 1)
    sq_ref[...] = jnp.sum(t2, axis=1, keepdims=True).reshape(1, c, 1)


# ----------------------------------------------------------------------------
# Pass 2: pack -> BN apply + 3x3x3 conv (one K-stacked bf16 MXU dot) + residual
#         -> unpack, all without any HBM-level layout transposes.
# ----------------------------------------------------------------------------
def _conv_kernel(f, h, w, c, x_ref, wk_ref, scale_ref, shift_ref, o_ref,
                 xpack_ref, acc_ref, patch_ref):
    j = pl.program_id(1)
    bt = x_ref.shape[0]
    wc = w * c
    n = bt * f * h

    # ---- phase 1 (j < c): pack the incoming channel plane into lanes [j*w:(j+1)*w]
    # (static pl.when branches keep all lane offsets static; c is small for this module)
    for ch in range(c):
        @pl.when(j == ch)
        def _pack(ch=ch):
            xpack_ref[:, :, :, ch * w:(ch + 1) * w] = x_ref[...].reshape(bt, f, h, w)

    # ---- phase 2 (j == c): BN apply + 27-tap conv as one K-stacked MXU dot + residual
    @pl.when(j == c)
    def _compute():
        x2 = xpack_ref[...].reshape(n, wc)                    # raw input (residual seed)
        xn = x2 * scale_ref[...] + shift_ref[...]             # BN applied in f32 (VPU)

        # Boundary masks, hoisted once (dest-row coordinates of the flattened rows).
        r = jax.lax.broadcasted_iota(jnp.int32, (n, 1), 0)
        hh = r % h                     # height index within a frame
        ff = (r // h) % f              # frame index within a clip
        d_mask = {-1: ff >= 1, 0: None, 1: ff <= f - 2}
        e_mask = {-1: hh >= 1, 0: None, 1: hh <= h - 2}

        # 9 (depth, height) taps -> lane-slices of one K-stacked bf16 patch; width
        # taps and width zero-padding live inside the banded weight.  Sublane
        # shifts ride the XLU via pltpu.roll; wrapped rows are masked to zero.
        for kd in range(3):
            d = kd - 1
            for kh in range(3):
                e = kh - 1
                tap = kd * 3 + kh
                shift = d * h + e       # flattened-row offset of this tap
                if shift % n == 0:
                    tapped = xn
                else:
                    # jnp.roll convention: roll(x, s)[r] = x[(r - s) % n]
                    tapped = pltpu.roll(xn, (-shift) % n, axis=0)
                m = d_mask[d]
                me = e_mask[e]
                if m is None:
                    m = me
                elif me is not None:
                    m = jnp.logical_and(m, me)
                if m is not None:
                    tapped = jnp.where(m, tapped, 0.0)
                patch_ref[:, tap * wc:(tap + 1) * wc] = tapped.astype(jnp.bfloat16)

        # One bf16 dot with K = 9*wc (fills the 256-deep MXU on v6e/v7x), f32 accum.
        conv = jnp.dot(patch_ref[...], wk_ref[...], preferred_element_type=jnp.float32)
        acc_ref[...] = (x2 + conv).reshape(bt, f, h, wc)      # residual add

    # ---- phase 3 (j >= c): stream output channel (j - c) back out, natural layout
    for ch in range(c):
        @pl.when(j == c + ch)
        def _emit(ch=ch):
            o_ref[...] = acc_ref[:, :, :, ch * w:(ch + 1) * w].reshape(bt, f, 1, h, w)


# ----------------------------------------------------------------------------
# Constant builder: K-stacked banded conv weight (jit-safe, all jnp)
# ----------------------------------------------------------------------------
def _build_stacked_band_weight(conv_w, w):
    """(cout, cin, 3, 3, 3) Conv3d weight -> (9*w*cin, w*cout) bf16 K-stacked bands.

    Lane packing is channel-major: lane = ci*w + x.  Row block t = kd*3 + kh holds
    the (depth, height) tap; width taps and width zero padding are the banded
    structure of each (w*cin, w*cout) block.  NOTE: each band is only ~3/w dense,
    so MXU flops are structurally ~w/3 x the algorithmic minimum; for small c this
    lane packing is still the right trade (128-wide operands, large M per dot).
    """
    cout, cin = conv_w.shape[0], conv_w.shape[1]
    xi = np.arange(w)[:, None]
    xo = np.arange(w)[None, :]
    # P[kw, xi, xo] = 1 iff xi == xo + (kw - 1)   (out-of-range == width zero pad)
    P = np.stack([(xi == xo + (kw - 1)).astype(np.float32) for kw in range(3)], axis=0)
    wk = jnp.einsum("oidhk,kxy->dhixoy", conv_w.astype(jnp.float32), jnp.asarray(P))
    return wk.reshape(9 * cin * w, cout * w).astype(jnp.bfloat16)


# ----------------------------------------------------------------------------
# Wrapper
# ----------------------------------------------------------------------------
def conv3d_block_forward(x, conv_w, gamma, beta, frame_count):
    """x: (b*frame_count, c, h, w) float32, PyTorch stacked-frame NCHW layout."""
    bf, c, h, w = x.shape
    if bf % frame_count:
        raise ValueError("leading dim must be divisible by frame_count")
    b = bf // frame_count
    f = frame_count
    wc = w * c
    if wc % 128 or h % 8:
        raise NotImplementedError(
            "kernel assumes w*c % 128 == 0 (lane packing) and h % 8 == 0 (sublanes)")

    x = x.astype(jnp.float32)
    x5 = x.reshape(b, f, c, h, w)        # free views of the PyTorch layout (no copies)
    x4 = x.reshape(b, f, c, h * w)

    vmem_limit = _vmem_limit_bytes()
    bt = _pick_batch_tile(b, f, h, w, c, act_budget_bytes=vmem_limit // 2)
    nb = b // bt
    rows_total = b * f * h

    # ---- pass 1: parallel per-tile per-channel partial sums / sums of squares ----
    part_sum, part_sq = pl.pallas_call(
        _stats_kernel,
        out_shape=(jax.ShapeDtypeStruct((nb, c, 1), jnp.float32),
                   jax.ShapeDtypeStruct((nb, c, 1), jnp.float32)),
        grid=(nb,),
        in_specs=[pl.BlockSpec((bt, f, c, h * w), lambda i: (i, 0, 0, 0))],
        out_specs=(pl.BlockSpec((1, c, 1), lambda i: (i, 0, 0)),
                   pl.BlockSpec((1, c, 1), lambda i: (i, 0, 0))),
        compiler_params=pltpu.CompilerParams(
            dimension_semantics=("parallel",), vmem_limit_bytes=vmem_limit),
        cost_estimate=pl.CostEstimate(flops=2 * x.size, transcendentals=0,
                                      bytes_accessed=x.size * 4),
    )(x4)

    # ---- finalize BN (tiny c-length vectors, training-mode biased variance) ----
    # NOTE: single-pass variance E[x^2]-E[x]^2 in f32, clamped at 0; adequate for
    # activation-scale data, swap to a centered second pass if |mean| >> std.
    count = float(b * f * h * w)
    sums = jnp.sum(part_sum, axis=0).reshape(c)
    sqs = jnp.sum(part_sq, axis=0).reshape(c)
    mean = sums / count
    var = jnp.maximum(sqs / count - mean * mean, 0.0)
    scale_c = gamma.astype(jnp.float32) * jax.lax.rsqrt(var + _EPS)
    shift_c = beta.astype(jnp.float32) - mean * scale_c
    scale_lane = jnp.repeat(scale_c, w).reshape(1, wc)       # lane = ci*w + x
    shift_lane = jnp.repeat(shift_c, w).reshape(1, wc)

    wk = _build_stacked_band_weight(conv_w, w)               # (9*wc, wc) bf16

    # ---- pass 2: pack / BN + conv (one K-stacked dot) + residual / unpack ----
    flops = 2 * rows_total * (9 * wc) * wc                   # MXU work incl. band zeros
    bytes_accessed = 2 * x.size * 4 + wk.size * 2
    out5 = pl.pallas_call(
        functools.partial(_conv_kernel, f, h, w, c),
        out_shape=jax.ShapeDtypeStruct((b, f, c, h, w), jnp.float32),
        grid=(nb, 2 * c),
        in_specs=[
            pl.BlockSpec((bt, f, 1, h, w),
                         lambda i, j: (i, 0, jnp.minimum(j, c - 1), 0, 0)),
            pl.BlockSpec((9 * wc, wc), lambda i, j: (0, 0)),
            pl.BlockSpec((1, wc), lambda i, j: (0, 0)),
            pl.BlockSpec((1, wc), lambda i, j: (0, 0)),
        ],
        out_specs=pl.BlockSpec((bt, f, 1, h, w),
                               lambda i, j: (i, 0, jnp.maximum(j - c, 0), 0, 0)),
        scratch_shapes=[
            pltpu.VMEM((bt, f, h, wc), jnp.float32),          # packed raw input (residual)
            pltpu.VMEM((bt, f, h, wc), jnp.float32),          # packed conv output
            pltpu.VMEM((bt * f * h, 9 * wc), jnp.bfloat16),   # K-stacked tap patches
        ],
        compiler_params=pltpu.CompilerParams(
            dimension_semantics=("parallel", "arbitrary"),
            vmem_limit_bytes=vmem_limit),
        cost_estimate=pl.CostEstimate(flops=int(flops), transcendentals=0,
                                      bytes_accessed=int(bytes_accessed)),
    )(x5, wk, scale_lane, shift_lane)

    return out5.reshape(bf, c, h, w)     # free view back to the PyTorch layout


# ----------------------------------------------------------------------------
# Pure-JAX reference mirroring the PyTorch module (training-mode BN)
# ----------------------------------------------------------------------------
def reference_forward(x, conv_w, gamma, beta, frame_count, eps=_EPS, operand_dtype=None):
    bf, c, h, w = x.shape
    b = bf // frame_count
    x5 = x.reshape(b, frame_count, c, h, w).transpose(0, 2, 1, 3, 4)  # NCDHW
    mean = jnp.mean(x5, axis=(0, 2, 3, 4), keepdims=True)
    var = jnp.mean((x5 - mean) ** 2, axis=(0, 2, 3, 4), keepdims=True)
    xn = (x5 - mean) / jnp.sqrt(var + eps)
    xn = xn * gamma.reshape(1, c, 1, 1, 1) + beta.reshape(1, c, 1, 1, 1)
    w_ = conv_w
    if operand_dtype is not None:   # emulate reduced-precision MXU operands
        xn = xn.astype(operand_dtype).astype(jnp.float32)
        w_ = conv_w.astype(operand_dtype).astype(jnp.float32)
    y = jax.lax.conv_general_dilated(
        xn, w_, window_strides=(1, 1, 1),
        padding=((1, 1), (1, 1), (1, 1)),
        dimension_numbers=("NCDHW", "OIDHW", "NCDHW"),
        precision=jax.lax.Precision.HIGHEST)
    y = y.transpose(0, 2, 1, 3, 4).reshape(bf, c, h, w)
    return y + x


if __name__ == "__main__":
    b, frame_count, c, h, w = 8, 4, 8, 16, 16        # x: (32, 8, 16, 16), w*c = 128 lanes
    key = jax.random.PRNGKey(0)
    kx, kw_, kg, kb = jax.random.split(key, 4)

    x = jax.random.normal(kx, (b * frame_count, c, h, w), jnp.float32)
    conv_w = 0.05 * jax.random.normal(kw_, (c, c, 3, 3, 3), jnp.float32)   # Conv3d, bias=False
    gamma = 1.0 + 0.1 * jax.random.normal(kg, (c,), jnp.float32)           # BN affine params
    beta = 0.1 * jax.random.normal(kb, (c,), jnp.float32)
    # TODO(synk): BatchNorm3d running-stat updates (training bookkeeping) are not
    # modeled; they do not affect the forward output.

    out = jax.block_until_ready(conv3d_block_forward(x, conv_w, gamma, beta, frame_count))

    # Tight check: same math with bf16-rounded conv operands (what the MXU sees).
    ref_bf16 = jax.block_until_ready(
        reference_forward(x, conv_w, gamma, beta, frame_count, operand_dtype=jnp.bfloat16))
    # Loose check: exact f32 module semantics; bf16 MXU operands cost a few 1e-3 abs.
    ref_f32 = jax.block_until_ready(reference_forward(x, conv_w, gamma, beta, frame_count))

    o = np.asarray(out)
    err_bf16 = float(np.max(np.abs(o - np.asarray(ref_bf16))))
    err_f32 = float(np.max(np.abs(o - np.asarray(ref_f32))))
    if not np.allclose(o, np.asarray(ref_bf16), rtol=5e-3, atol=5e-3):
        raise AssertionError(f"mismatch vs bf16-operand reference, max abs err = {err_bf16}")
    if not np.allclose(o, np.asarray(ref_f32), rtol=2e-2, atol=2e-2):
        raise AssertionError(f"mismatch vs f32 reference, max abs err = {err_f32}")
    print("KERNEL_OK")
</pallas_src>

<mosaic_0001>
module attributes {stable_mosaic.version = 11 : i64} {
  func.func @_stats_kernel(%arg0: i32, %arg1: memref<4x4x8x256xf32, #tpu.memory_space<vmem>>, %arg2: memref<1x8x1xf32, #tpu.memory_space<vmem>>, %arg3: memref<1x8x1xf32, #tpu.memory_space<vmem>>) attributes {dimension_semantics = [#tpu.dimension_semantics<parallel>], iteration_bounds = array<i64: 2>, scalar_prefetch = 0 : i64, scratch_operands = 0 : i64, tpu.core_type = #tpu.core_type<tc>, window_params = [{transform_indices = @transform_0, window_bounds = array<i64: 4, 4, 8, 256>}, {transform_indices = @transform_1, window_bounds = array<i64: 1, 8, 1>}, {transform_indices = @transform_2, window_bounds = array<i64: 1, 8, 1>}]} {
    %c0 = arith.constant 0 : index
    %c0_0 = arith.constant 0 : index
    %c0_1 = arith.constant 0 : index
    %c0_2 = arith.constant 0 : index
    %0 = vector.load %arg1[%c0, %c0_0, %c0_1, %c0_2] : memref<4x4x8x256xf32, #tpu.memory_space<vmem>>, vector<4x4x8x256xf32>
    %cst = arith.constant dense<0.000000e+00> : vector<4x8x256xf32>
    %1 = vector.multi_reduction <add>, %0, %cst [0] : vector<4x4x8x256xf32> to vector<4x8x256xf32>
    %cst_3 = arith.constant dense<0.000000e+00> : vector<8x256xf32>
    %2 = vector.multi_reduction <add>, %1, %cst_3 [0] : vector<4x8x256xf32> to vector<8x256xf32>
    %3 = arith.mulf %0, %0 : vector<4x4x8x256xf32>
    %cst_4 = arith.constant dense<0.000000e+00> : vector<4x8x256xf32>
    %4 = vector.multi_reduction <add>, %3, %cst_4 [0] : vector<4x4x8x256xf32> to vector<4x8x256xf32>
    %cst_5 = arith.constant dense<0.000000e+00> : vector<8x256xf32>
    %5 = vector.multi_reduction <add>, %4, %cst_5 [0] : vector<4x8x256xf32> to vector<8x256xf32>
    %cst_6 = arith.constant dense<0.000000e+00> : vector<8xf32>
    %6 = vector.multi_reduction <add>, %2, %cst_6 [1] : vector<8x256xf32> to vector<8xf32>
    %7 = vector.shape_cast %6 : vector<8xf32> to vector<8x1xf32>
    %8 = vector.shape_cast %7 : vector<8x1xf32> to vector<1x8x1xf32>
    %c0_7 = arith.constant 0 : index
    %c0_8 = arith.constant 0 : index
    %c0_9 = arith.constant 0 : index
    %9 = vector.load %arg2[%c0_7, %c0_8, %c0_9] : memref<1x8x1xf32, #tpu.memory_space<vmem>>, vector<1x8x1xf32>
    tpu.vector_store %arg2[%c0_7, %c0_8, %c0_9], %8 {strides = array<i32>} : memref<1x8x1xf32, #tpu.memory_space<vmem>>, vector<1x8x1xf32>,
    %cst_10 = arith.constant dense<0.000000e+00> : vector<8xf32>
    %10 = vector.multi_reduction <add>, %5, %cst_10 [1] : vector<8x256xf32> to vector<8xf32>
    %11 = vector.shape_cast %10 : vector<8xf32> to vector<8x1xf32>
    %12 = vector.shape_cast %11 : vector<8x1xf32> to vector<1x8x1xf32>
    %c0_11 = arith.constant 0 : index
    %c0_12 = arith.constant 0 : index
    %c0_13 = arith.constant 0 : index
    %13 = vector.load %arg3[%c0_11, %c0_12, %c0_13] : memref<1x8x1xf32, #tpu.memory_space<vmem>>, vector<1x8x1xf32>
    tpu.vector_store %arg3[%c0_11, %c0_12, %c0_13], %12 {strides = array<i32>} : memref<1x8x1xf32, #tpu.memory_space<vmem>>, vector<1x8x1xf32>,
    return
  }
  func.func @transform_0(%arg0: i32) -> (i32, i32, i32, i32) {
    %c0_i32 = arith.constant 0 : i32
    %c0_i32_0 = arith.constant 0 : i32
    %c0_i32_1 = arith.constant 0 : i32
    %c0_i32_2 = arith.constant 0 : i32
    return %arg0, %c0_i32, %c0_i32_0, %c0_i32_1 : i32, i32, i32, i32
  }
  func.func @transform_1(%arg0: i32) -> (i32, i32, i32) {
    %c0_i32 = arith.constant 0 : i32
    %c0_i32_0 = arith.constant 0 : i32
    %c0_i32_1 = arith.constant 0 : i32
    return %arg0, %c0_i32, %c0_i32_0 : i32, i32, i32
  }
  func.func @transform_2(%arg0: i32) -> (i32, i32, i32) {
    %c0_i32 = arith.constant 0 : i32
    %c0_i32_0 = arith.constant 0 : i32
    %c0_i32_1 = arith.constant 0 : i32
    return %arg0, %c0_i32, %c0_i32_0 : i32, i32, i32
  }
}

</mosaic_0001>

<llo_original>
// kernel: tpu_custom_call.1
$region0: #{tpu_custom_call.1}
  #allocation0 [shape = 'u32[]', space=smem, size = 0x4, offset = 0x4, fixed_abs, tag = 'smem constant byte address 0x4 - core index']
  #allocation1 [shape = 'u32[72,128]{1,0:T(1,128)}', space=vmem, size = 0x9000, scoped, tag = 'internal scratch']
  %s0 = inlined_call_operand.hbm [shape: f32[8,4,8,256], index: 0, kind: input, shape index: {}]
  %s1 = inlined_call_operand.vmem [shape: f32[2,8,1], index: 1, kind: output, shape index: {0}]
  %s2 = inlined_call_operand.vmem [shape: f32[2,8,1], index: 2, kind: output, shape index: {1}]
  %3 = xla_tuple %s1, %s2
  %s4 = sld [smem:[#allocation0]]
  $region49: #{tpu_custom_call.1} parent=0
    _
  %s6 = ssub.s32 1, %s4
  %s7 = scalar_select 0, %s6, %s4
  $region1: #{tpu_custom_call.1} parent=0
    #allocation2 [shape = 'u8[262144]{0}', space=vmem, size = 0x40000, scoped, tag = 'input window, operand 0']
    #allocation3 [shape = 's32[2]{0}', space=sflag, size = 0x8, scoped, tag = 'scoped memory for tpu_custom_call.1']
    %8 = vsyncpa [#allocation3], 0
    %s9 = scalar_lea.sflag [#allocation3], 1
    %10 = vsyncpa %s9, 0
    loop: start=0, step=1, limit=4
    $region2: #{tpu_custom_call.1} parent=1 // loop_pre_header
      _
    $region3: #{tpu_custom_call.1} parent=1 // loop_header
      %s12 = sphi 0, %s16
      %p13 = scmp.ge.s32.totalorder %s12, 4
      %s22 = sphi 0, %s24
      %s25 = sphi 0, %s22
      %s26 = sphi 0, %s25
      %s42 = sphi 0, %s26
      %s48 = sphi 0, %s50
      %s51 = sphi 0, %s48
      %s52 = sphi 0, %s51
      %s68 = sphi 0, %s52
      %s74 = sphi 0, %s76
      %s77 = sphi 0, %s74
      %s78 = sphi 0, %s77
      %s94 = sphi 0, %s78
    $region4: #{tpu_custom_call.1} parent=1 // loop_header_branch
      %15 = sbr.rel (%p13) target = $region8
    $region5: #{tpu_custom_call.1} parent=1 // loop_body
      %s17 = ssub.s32 %s12, 1
      %s18 = ssub.s32 %s12, 2
      %s19 = sadd.s32 %s12, 1
      %s20 = ssub.s32 %s12, %s19
      %p21 = scmp.eq.s32.totalorder %s20, 0
      %s23 = sadd.s32 %s22, 1
      %s24 = scalar_select %p21, %s22, %s23
      %p27 = pneg %p21
      %p28 = scmp.eq.s32.totalorder %s12, 1
      %p29 = por %p27, %p28
      %p30 = scmp.ne.s32.totalorder %s22, %s25
      %p31 = scmp.eq.s32.totalorder %s12, 0
      %p32 = por %p30, %p31
      %p33 = scmp.ne.s32.totalorder %s22, %s25
      %p34 = scmp.eq.s32.totalorder %s17, 1
      %p35 = por %p33, %p34
      %p36 = scmp.ne.s32.totalorder %s25, %s26
      %p37 = scmp.eq.s32.totalorder %s17, 0
      %p38 = por %p36, %p37
      %p39 = scmp.ne.s32.totalorder %s25, %s26
      %p40 = scmp.eq.s32.totalorder %s18, 1
      %p41 = por %p39, %p40
      %p43 = scmp.ne.s32.totalorder %s26, %s42
      %p44 = scmp.eq.s32.totalorder %s18, 0
      %p45 = por %p43, %p44
      %s46 = ssub.s32 %s12, %s19
      %p47 = scmp.eq.s32.totalorder %s46, 0
      %s49 = sadd.s32 %s48, 1
      %s50 = scalar_select %p47, %s48, %s49
      %p53 = pneg %p47
      %p54 = scmp.eq.s32.totalorder %s12, 1
      %p55 = por %p53, %p54
      %p56 = scmp.ne.s32.totalorder %s48, %s51
      %p57 = scmp.eq.s32.totalorder %s12, 0
      %p58 = por %p56, %p57
      %p59 = scmp.ne.s32.totalorder %s48, %s51
      %p60 = scmp.eq.s32.totalorder %s17, 1
      %p61 = por %p59, %p60
      %p62 = scmp.ne.s32.totalorder %s51, %s52
      %p63 = scmp.eq.s32.totalorder %s17, 0
      %p64 = por %p62, %p63
      %p65 = scmp.ne.s32.totalorder %s51, %s52
      %p66 = scmp.eq.s32.totalorder %s18, 1
      %p67 = por %p65, %p66
      %p69 = scmp.ne.s32.totalorder %s52, %s68
      %p70 = scmp.eq.s32.totalorder %s18, 0
      %p71 = por %p69, %p70
      %s72 = ssub.s32 %s12, %s19
      %p73 = scmp.eq.s32.totalorder %s72, 0
      %s75 = sadd.s32 %s74, 1
      %s76 = scalar_select %p73, %s74, %s75
      %p79 = pneg %p73
      %p80 = scmp.eq.s32.totalorder %s12, 1
      %p81 = por %p79, %p80
      %p82 = scmp.ne.s32.totalorder %s74, %s77
      %p83 = scmp.eq.s32.totalorder %s12, 0
      %p84 = por %p82, %p83
      %p85 = scmp.ne.s32.totalorder %s74, %s77
      %p86 = scmp.eq.s32.totalorder %s17, 1
      %p87 = por %p85, %p86
      %p88 = scmp.ne.s32.totalorder %s77, %s78
      %p89 = scmp.eq.s32.totalorder %s17, 0
      %p90 = por %p88, %p89
      %p91 = scmp.ne.s32.totalorder %s77, %s78
      %p92 = scmp.eq.s32.totalorder %s18, 1
      %p93 = por %p91, %p92
      %p95 = scmp.ne.s32.totalorder %s78, %s94
      %p96 = scmp.eq.s32.totalorder %s18, 0
      %p97 = por %p95, %p96
      %p98 = scmp.le.s32.totalorder 1, %s12
      %p99 = scmp.lt.s32.totalorder %s12, 3
      %p100 = pnand %p98, %p99
      %p101 = pneg %p100
      // Predicated region
      $region9: #{tpu_custom_call.1} parent=5 // pred_check
        _
      $region10: #{tpu_custom_call.1} parent=5 // pred_check_branch
        %103 = sbr.rel (%p100) target = $region12
      $region11: #{tpu_custom_call.1} parent=5 // pred_region
        %s104 = ssub.s32 %s12, 1
      $region12: #{tpu_custom_call.1} parent=5 // pred_fallthru
        _
      %p105 = scmp.lt.s32.totalorder %s12, 2
      // Predicated region
      $region13: #{tpu_custom_call.1} parent=5 // pred_check
        %p106 = pneg %p105
      $region14: #{tpu_custom_call.1} parent=5 // pred_check_branch
        %108 = sbr.rel (%p106) target = $region16
      $region15: #{tpu_custom_call.1} parent=5 // pred_region
        // Predicated region
        $region17: #{tpu_custom_call.1} parent=15 // pred_check
          %p109 = pneg %p32
        $region18: #{tpu_custom_call.1} parent=15 // pred_check_branch
          %111 = sbr.rel (%p109) target = $region20
        $region19: #{tpu_custom_call.1} parent=15 // pred_region
          %s112 = sand.u32 %s22, 1
          %s113 = scalar_lea.sflag [#allocation3], %s112
          %s114 = sand.u32 %s22, 1
          %s115 = smul.addr %s114, 256
          %s116 = scalar_lea.vmem [#allocation2], %s115
          %s117 = smul.u32 4, %s12
          %119 = vsyncadd %s113, 0
          %s120 = smul.addr %s117, 8
          %s121 = smul.addr %s120, 8
          %s122 = scalar_lea.hbm %s0, %s121
          %s123 = sshll.u32 %s122, 4
          %s124 = int_to_ptr.hbm [resolvable:$true] %s123
          %s125 = sshll.u32 %s116, 4
          %s126 = int_to_ptr.vmem [resolvable:$true] %s125
          %131 = dma.hbm_to_vmem [thread:$0]  %s124, 4096, %s126, %s113, 256, 256, 16
        $region20: #{tpu_custom_call.1} parent=15 // pred_fallthru
          _
      $region16: #{tpu_custom_call.1} parent=5 // pred_fallthru
        _
      %p132 = scmp.le.s32.totalorder 1, %s12
      %p133 = scmp.lt.s32.totalorder %s12, 3
      %p134 = pnand %p132, %p133
      %p135 = pneg %p134
      // Predicated region
      $region21: #{tpu_custom_call.1} parent=5 // pred_check
        _
      $region22: #{tpu_custom_call.1} parent=5 // pred_check_branch
        %137 = sbr.rel (%p134) target = $region24
      $region23: #{tpu_custom_call.1} parent=5 // pred_region
        %s138 = ssub.s32 %s12, 1
        %s139 = sand.u32 %s25, 1
        %s140 = scalar_lea.sflag [#allocation3], %s139
        %s141 = sand.u32 %s25, 1
        %s142 = smul.addr %s141, 256
        %s143 = scalar_lea.vmem [#allocation2], %s142
        // Predicated region
        $region25: #{tpu_custom_call.1} parent=23 // pred_check
          %p144 = pneg %p38
        $region26: #{tpu_custom_call.1} parent=23 // pred_check_branch
          %146 = sbr.rel (%p144) target = $region28
        $region27: #{tpu_custom_call.1} parent=23 // pred_region
          %148 = dma.done %s140, 4096
        $region28: #{tpu_custom_call.1} parent=23 // pred_fallthru
          _
        %s149 = sand.u32 %s25, 1
        %s150 = scalar_lea.sflag [#allocation3], %s149
        %s151 = sand.u32 %s25, 1
        %s152 = smul.addr %s151, 256
        %s153 = scalar_lea.vmem [#allocation2], %s152
        %p154 = pneg %p38
        %p155 = pneg %p35
        %p156 = pneg %p64
        %p157 = pneg %p61
        %p158 = scmp.lt.s32.totalorder %s17, 1
        %s159 = scalar_select %p158, %s17, 1
        %s160 = smul.addr %s159, 8
        %s161 = scalar_lea.vmem %s1, %s160
        %p162 = pneg %p90
        %p163 = pneg %p87
        %p164 = scmp.lt.s32.totalorder %s17, 1
        %s165 = scalar_select %p164, %s17, 1
        %s166 = smul.addr %s165, 8
        %s167 = scalar_lea.vmem %s2, %s166
        %s168 = smul.u32 4, %s17
        %p169 = scmp.lt.s32.totalorder %s17, 1
        %s170 = scalar_select %p169, %s17, 1
        %s171 = smul.addr %s170, 8
        %s172 = scalar_lea.vmem %s1, %s171
        %p173 = scmp.lt.s32.totalorder %s17, 1
        %s174 = scalar_select %p173, %s17, 1
        %s175 = smul.addr %s174, 8
        %s176 = scalar_lea.vmem %s2, %s175
        %v177 = vld [vmem:[%s143] sm:$0xff]
        %v178 = vld [vmem:[%s143 + $0x8] sm:$0xff]
        %v179 = vld [vmem:[%s143 + $0x10] sm:$0xff]
        %v180 = vld [vmem:[%s143 + $0x18] sm:$0xff]
        %v181 = vld [vmem:[%s143 + $0x20] sm:$0xff]
        %v182 = vld [vmem:[%s143 + $0x28] sm:$0xff]
        %v183 = vld [vmem:[%s143 + $0x30] sm:$0xff]
        %v184 = vld [vmem:[%s143 + $0x38] sm:$0xff]
        %v185 = vld [vmem:[%s143 + $0x40] sm:$0xff]
        %v186 = vld [vmem:[%s143 + $0x48] sm:$0xff]
        %v187 = vld [vmem:[%s143 + $0x50] sm:$0xff]
        %v188 = vld [vmem:[%s143 + $0x58] sm:$0xff]
        %v189 = vld [vmem:[%s143 + $0x60] sm:$0xff]
        %v190 = vld [vmem:[%s143 + $0x68] sm:$0xff]
        %v191 = vld [vmem:[%s143 + $0x70] sm:$0xff]
        %v192 = vld [vmem:[%s143 + $0x78] sm:$0xff]
        %v193 = vld [vmem:[%s143 + $0x80] sm:$0xff]
        %v194 = vld [vmem:[%s143 + $0x88] sm:$0xff]
        %v195 = vld [vmem:[%s143 + $0x90] sm:$0xff]
        %v196 = vld [vmem:[%s143 + $0x98] sm:$0xff]
        %v197 = vld [vmem:[%s143 + $0xa0] sm:$0xff]
        %v198 = vld [vmem:[%s143 + $0xa8] sm:$0xff]
        %v199 = vld [vmem:[%s143 + $0xb0] sm:$0xff]
        %v200 = vld [vmem:[%s143 + $0xb8] sm:$0xff]
        %v201 = vld [vmem:[%s143 + $0xc0] sm:$0xff]
        %v202 = vld [vmem:[%s143 + $0xc8] sm:$0xff]
        %v203 = vld [vmem:[%s143 + $0xd0] sm:$0xff]
        %v204 = vld [vmem:[%s143 + $0xd8] sm:$0xff]
        %v205 = vld [vmem:[%s143 + $0xe0] sm:$0xff]
        %v206 = vld [vmem:[%s143 + $0xe8] sm:$0xff]
        %v207 = vld [vmem:[%s143 + $0xf0] sm:$0xff]
        %v208 = vld [vmem:[%s143 + $0xf8] sm:$0xff]
        %v209 = vadd.f32 %v177, %v185
        %v210 = vadd.f32 %v209, %v193
        %v211 = vadd.f32 %v210, %v201
        %v212 = vadd.f32 %v178, %v186
        %v213 = vadd.f32 %v212, %v194
        %v214 = vadd.f32 %v213, %v202
        %v215 = vadd.f32 %v179, %v187
        %v216 = vadd.f32 %v215, %v195
        %v217 = vadd.f32 %v216, %v203
        %v218 = vadd.f32 %v180, %v188
        %v219 = vadd.f32 %v218, %v196
        %v220 = vadd.f32 %v219, %v204
        %v221 = vadd.f32 %v181, %v189
        %v222 = vadd.f32 %v221, %v197
        %v223 = vadd.f32 %v222, %v205
        %v224 = vadd.f32 %v182, %v190
        %v225 = vadd.f32 %v224, %v198
        %v226 = vadd.f32 %v225, %v206
        %v227 = vadd.f32 %v183, %v191
        %v228 = vadd.f32 %v227, %v199
        %v229 = vadd.f32 %v228, %v207
        %v230 = vadd.f32 %v184, %v192
        %v231 = vadd.f32 %v230, %v200
        %v232 = vadd.f32 %v231, %v208
        %v233 = vadd.f32 %v211, %v217
        %v234 = vadd.f32 %v233, %v223
        %v235 = vadd.f32 %v234, %v229
        %v236 = vadd.f32 %v214, %v220
        %v237 = vadd.f32 %v236, %v226
        %v238 = vadd.f32 %v237, %v232
        %v239 = vmul.f32 %v177, %v177
        %v240 = vmul.f32 %v178, %v178
        %v241 = vmul.f32 %v179, %v179
        %v242 = vmul.f32 %v180, %v180
        %v243 = vmul.f32 %v181, %v181
        %v244 = vmul.f32 %v182, %v182
        %v245 = vmul.f32 %v183, %v183
        %v246 = vmul.f32 %v184, %v184
        %v247 = vmul.f32 %v185, %v185
        %v248 = vmul.f32 %v186, %v186
        %v249 = vmul.f32 %v187, %v187
        %v250 = vmul.f32 %v188, %v188
        %v251 = vmul.f32 %v189, %v189
        %v252 = vmul.f32 %v190, %v190
        %v253 = vmul.f32 %v191, %v191
        %v254 = vmul.f32 %v192, %v192
        %v255 = vmul.f32 %v193, %v193
        %v256 = vmul.f32 %v194, %v194
        %v257 = vmul.f32 %v195, %v195
        %v258 = vmul.f32 %v196, %v196
        %v259 = vmul.f32 %v197, %v197
        %v260 = vmul.f32 %v198, %v198
        %v261 = vmul.f32 %v199, %v199
        %v262 = vmul.f32 %v200, %v200
        %v263 = vmul.f32 %v201, %v201
        %v264 = vmul.f32 %v202, %v202
        %v265 = vmul.f32 %v203, %v203
        %v266 = vmul.f32 %v204, %v204
        %v267 = vmul.f32 %v205, %v205
        %v268 = vmul.f32 %v206, %v206
        %v269 = vmul.f32 %v207, %v207
        %v270 = vmul.f32 %v208, %v208
        %v271 = vadd.f32 %v239, %v247
        %v272 = vadd.f32 %v271, %v255
        %v273 = vadd.f32 %v272, %v263
        %v274 = vadd.f32 %v240, %v248
        %v275 = vadd.f32 %v274, %v256
        %v276 = vadd.f32 %v275, %v264
        %v277 = vadd.f32 %v241, %v249
        %v278 = vadd.f32 %v277, %v257
        %v279 = vadd.f32 %v278, %v265
        %v280 = vadd.f32 %v242, %v250
        %v281 = vadd.f32 %v280, %v258
        %v282 = vadd.f32 %v281, %v266
        %v283 = vadd.f32 %v243, %v251
        %v284 = vadd.f32 %v283, %v259
        %v285 = vadd.f32 %v284, %v267
        %v286 = vadd.f32 %v244, %v252
        %v287 = vadd.f32 %v286, %v260
        %v288 = vadd.f32 %v287, %v268
        %v289 = vadd.f32 %v245, %v253
        %v290 = vadd.f32 %v289, %v261
        %v291 = vadd.f32 %v290, %v269
        %v292 = vadd.f32 %v246, %v254
        %v293 = vadd.f32 %v292, %v262
        %v294 = vadd.f32 %v293, %v270
        %v295 = vadd.f32 %v273, %v279
        %v296 = vadd.f32 %v295, %v285
        %v297 = vadd.f32 %v296, %v291
        %v298 = vadd.f32 %v276, %v282
        %v299 = vadd.f32 %v298, %v288
        %v300 = vadd.f32 %v299, %v294
        %v301 = vadd.f32 %v235, %v238
        %302 = vadd.xlane.f32.xlu0 %v301
        %v303 = vpop.xlane.xlu0 %302
        %vm304 = vcmask 7168
        %305 = vst.msk [vmem:[%s172] sm:$0xff] %vm304, %v303
        %v306 = vadd.f32 %v297, %v300
        %307 = vadd.xlane.f32.xlu0 %v306
        %v308 = vpop.xlane.xlu0 %307
        %309 = vst.msk [vmem:[%s176] sm:$0xff] %vm304, %v308
        %p310 = scmp.lt.s32.totalorder %s17, 1
        %s311 = scalar_select %p310, %s17, 1
        %s312 = smul.addr %s311, 8
        %s313 = scalar_lea.vmem %s1, %s312
        %p314 = scmp.lt.s32.totalorder %s17, 1
        %s315 = scalar_select %p314, %s17, 1
        %s316 = smul.addr %s315, 8
        %s317 = scalar_lea.vmem %s2, %s316
        // Predicated region
        $region29: #{tpu_custom_call.1} parent=23 // pred_check
          %p318 = pneg %p61
        $region30: #{tpu_custom_call.1} parent=23 // pred_check_branch
          %320 = sbr.rel (%p318) target = $region32
        $region31: #{tpu_custom_call.1} parent=23 // pred_region
          _
        $region32: #{tpu_custom_call.1} parent=23 // pred_fallthru
          _
        // Predicated region
        $region33: #{tpu_custom_call.1} parent=23 // pred_check
          %p321 = pneg %p87
        $region34: #{tpu_custom_call.1} parent=23 // pred_check_branch
          %323 = sbr.rel (%p321) target = $region36
        $region35: #{tpu_custom_call.1} parent=23 // pred_region
          _
        $region36: #{tpu_custom_call.1} parent=23 // pred_fallthru
          _
      $region24: #{tpu_custom_call.1} parent=5 // pred_fallthru
        _
      %p324 = scmp.le.s32.totalorder 2, %s12
      // Predicated region
      $region37: #{tpu_custom_call.1} parent=5 // pred_check
        %p325 = pneg %p324
      $region38: #{tpu_custom_call.1} parent=5 // pred_check_branch
        %327 = sbr.rel (%p325) target = $region40
      $region39: #{tpu_custom_call.1} parent=5 // pred_region
        %s328 = ssub.s32 %s12, 2
        // Predicated region
        $region41: #{tpu_custom_call.1} parent=39 // pred_check
          %p329 = pneg %p67
        $region42: #{tpu_custom_call.1} parent=39 // pred_check_branch
          %331 = sbr.rel (%p329) target = $region44
        $region43: #{tpu_custom_call.1} parent=39 // pred_region
          %p332 = scmp.lt.s32.totalorder %s18, 1
          %s333 = scalar_select %p332, %s18, 1
          %s334 = smul.addr %s333, 8
          %s335 = scalar_lea.vmem %s1, %s334
        $region44: #{tpu_custom_call.1} parent=39 // pred_fallthru
          _
        // Predicated region
        $region45: #{tpu_custom_call.1} parent=39 // pred_check
          %p336 = pneg %p93
        $region46: #{tpu_custom_call.1} parent=39 // pred_check_branch
          %338 = sbr.rel (%p336) target = $region48
        $region47: #{tpu_custom_call.1} parent=39 // pred_region
          %p339 = scmp.lt.s32.totalorder %s18, 1
          %s340 = scalar_select %p339, %s18, 1
          %s341 = smul.addr %s340, 8
          %s342 = scalar_lea.vmem %s2, %s341
        $region48: #{tpu_custom_call.1} parent=39 // pred_fallthru
          _
      $region40: #{tpu_custom_call.1} parent=5 // pred_fallthru
        _
    $region6: #{tpu_custom_call.1} parent=1 // loop_footer
      %s16 = sadd.s32 1, %s12
    $region7: #{tpu_custom_call.1} parent=1 // loop_footer_branch
      %11 = sbr.rel target = $region3
    $region8: #{tpu_custom_call.1} parent=1 // loop_exit
      _
    %343 = vsyncpa [#allocation3], 1
    %s344 = scalar_lea.sflag [#allocation3], 1
    %345 = vsyncpa %s344, 1

</llo_original>
